<compile_context>
chip_gen: v5e
topology: v5e:2x2
jax: 0.10.0
libtpu: 0.0.40
codegen_flags: <defaults>
</compile_context>

<pallas_src>
import functools

import jax
import jax.numpy as jnp
from jax import lax
from jax.experimental import pallas as pl
from jax.experimental.pallas import tpu as pltpu

LANE = 128

# ---------------------------------------------------------------------------
# Dormand-Prince 5(4) tableau (same coefficients as torchdiffeq dopri5).
# ---------------------------------------------------------------------------
_A21 = 1.0 / 5.0
_A31, _A32 = 3.0 / 40.0, 9.0 / 40.0
_A41, _A42, _A43 = 44.0 / 45.0, -56.0 / 15.0, 32.0 / 9.0
_A51, _A52, _A53, _A54 = (19372.0 / 6561.0, -25360.0 / 2187.0,
                          64448.0 / 6561.0, -212.0 / 729.0)
_A61, _A62, _A63, _A64, _A65 = (9017.0 / 3168.0, -355.0 / 33.0,
                                46732.0 / 5247.0, 49.0 / 176.0,
                                -5103.0 / 18656.0)
_B1, _B3, _B4, _B5, _B6 = (35.0 / 384.0, 500.0 / 1113.0, 125.0 / 192.0,
                           -2187.0 / 6784.0, 11.0 / 84.0)
# 5th-order minus embedded 4th-order weights -> direct error estimate.
_E1 = 35.0 / 384.0 - 5179.0 / 57600.0
_E3 = 500.0 / 1113.0 - 7571.0 / 16695.0
_E4 = 125.0 / 192.0 - 393.0 / 640.0
_E5 = -2187.0 / 6784.0 + 92097.0 / 339200.0
_E6 = 11.0 / 84.0 - 187.0 / 2100.0
_E7 = -1.0 / 40.0


def _round_up(x, m):
    return ((x + m - 1) // m) * m


# ---------------------------------------------------------------------------
# Fused Pallas kernel: full adaptive dopri5 solve for one output segment
# (grid axis iterates over the T-1 segments; z / h carried via scratch).
# ---------------------------------------------------------------------------
def _ode_solve_kernel(t_ref, z0_ref, w1_ref, w2_ref, b2_ref,
                      out_ref, z_carry, h_state,
                      *, rtol, atol, n_real, max_steps):
    seg = pl.program_id(0)

    @pl.when(seg == 0)
    def _init():
        z_carry[...] = z0_ref[...]
        h_state[0] = (t_ref[1] - t_ref[0]) * 0.1   # initial-step heuristic

    t_start = t_ref[seg]
    t_end = t_ref[seg + 1]

    B, Dp = z_carry.shape

    # b2 broadcast hoisted once per segment (single vreg).  W1/W2 are
    # deliberately NOT hoisted: f() re-reads them from VMEM per dot so they
    # don't stay live (and force spills) across the while loop.
    b2b = jnp.broadcast_to(b2_ref[...].astype(jnp.float32), (B, Dp))

    def f(y):
        # bf16 MXU inputs, f32 accumulation.  b1 is folded into W1 via the
        # pinned all-ones state column (see wrapper); state math stays f32.
        hid = jnp.tanh(jnp.dot(y.astype(jnp.bfloat16), w1_ref[...],
                               preferred_element_type=jnp.float32))
        return jnp.dot(hid.astype(jnp.bfloat16), w2_ref[...],
                       preferred_element_type=jnp.float32) + b2b

    inv_n = jnp.float32(1.0 / n_real)
    eps = 1e-7 * jnp.maximum(jnp.abs(t_end), 1.0)
    safety = jnp.float32(0.9)
    min_factor = jnp.float32(0.2)
    max_factor = jnp.float32(10.0)

    # z and k1 live in the while-loop carry (registers); scratch is touched
    # once per segment.  k_init seeds FSAL (one f() eval per segment).
    z_init = z_carry[...]
    k_init = f(z_init)

    def cond(state):
        tc, _, it, _, _ = state
        return jnp.logical_and(tc < t_end - eps, it < max_steps)

    def body(state):
        tc, h, it, z, k1 = state
        h_try = jnp.minimum(h, t_end - tc)

        # h-pre-scaled stages: hk_i = h_try * k_i.  Stage 1 is FSAL-reused.
        hk1 = h_try * k1
        hk2 = h_try * f(z + _A21 * hk1)
        hk3 = h_try * f(z + (_A31 * hk1 + _A32 * hk2))
        hk4 = h_try * f(z + (_A41 * hk1 + _A42 * hk2 + _A43 * hk3))
        hk5 = h_try * f(z + (_A51 * hk1 + _A52 * hk2 + _A53 * hk3
                             + _A54 * hk4))
        hk6 = h_try * f(z + (_A61 * hk1 + _A62 * hk2 + _A63 * hk3
                             + _A64 * hk4 + _A65 * hk5))
        z5 = z + (_B1 * hk1 + _B3 * hk3 + _B4 * hk4 + _B5 * hk5 + _B6 * hk6)
        k7 = f(z5)                       # needed for error est.; FSAL k1 next
        hk7 = h_try * k7
        err = (_E1 * hk1 + _E3 * hk3 + _E4 * hk4 + _E5 * hk5
               + _E6 * hk6 + _E7 * hk7)

        # In-kernel error norm -> scalar.  Divide via EUP approx reciprocal.
        tol = atol + rtol * jnp.maximum(jnp.abs(z), jnp.abs(z5))
        ratio = err * pl.reciprocal(tol, approx=True)
        s = jnp.sum(ratio * ratio) * inv_n          # s = err_norm ** 2

        # NaN guard (NaN fails `>= 0`): reject & shrink instead of hanging.
        finite = jnp.logical_and(s >= 0.0, s < jnp.float32(1e30))
        accept = jnp.logical_and(finite, s <= 1.0)

        # factor = safety * err_norm**(-0.2) = safety * s**(-0.1).
        # Transcendentals computed on a (1,1) vector (EUP path), then reduced
        # back to a scalar.
        s_v = jnp.broadcast_to(s, (1, 1))
        fac_v = jnp.clip(
            safety * jnp.exp(jnp.float32(-0.1)
                             * jnp.log(jnp.maximum(s_v, jnp.float32(1e-20)))),
            min_factor, max_factor)
        factor = jnp.sum(fac_v)
        factor = jnp.where(finite, factor, min_factor)

        z_new = jnp.where(accept, z5, z)
        k1_new = jnp.where(accept, k7, k1)           # FSAL hand-off
        tc_new = jnp.where(accept, tc + h_try, tc)

        # Next step size: carry the UNclamped h across output-time boundaries
        # (don't let the clamp-to-t_end artificially shrink subsequent steps).
        h_scaled = h_try * factor
        clamped = h_try < h
        h_new = jnp.where(jnp.logical_and(accept, clamped),
                          jnp.maximum(h, h_scaled), h_scaled)
        return tc_new, h_new, it + 1, z_new, k1_new

    _, h_final, _, z_final, _ = lax.while_loop(
        cond, body, (t_start, h_state[0], jnp.int32(0), z_init, k_init))

    h_state[0] = h_final
    z_carry[...] = z_final
    out_ref[...] = z_final


# ---------------------------------------------------------------------------
# Wrapper: padding to lane-dense shapes + single fused pallas_call.
# ---------------------------------------------------------------------------
@functools.partial(jax.jit, static_argnames=("rtol", "atol", "max_steps"))
def adaptive_neural_ode(z0, t, w1, b1, w2, b2, rtol=1e-3, atol=1e-3,
                        max_steps=10_000):
    """Forward pass of AdaptiveNeuralODE: solution at times t, shape [T, B, D]."""
    z0 = z0.astype(jnp.float32)
    t = t.astype(jnp.float32)
    B, D = z0.shape
    Hm = w1.shape[1]
    T = t.shape[0]

    # Lane-dense zero padding of the feature dims.  D is padded with at least
    # one extra column so b1 can be folded into W1 via a pinned all-ones state
    # column.  Padding is exact: padded / pinned components have identically
    # zero dynamics and zero error contribution, and the error norm divides by
    # the REAL element count.
    Dp = _round_up(D + 1, LANE)
    Hp = _round_up(Hm, LANE)

    b1f = jnp.reshape(b1.astype(jnp.float32), (Hm,))
    b2f = jnp.reshape(b2.astype(jnp.float32), (D,))

    z0p = (jnp.zeros((B, Dp), jnp.float32)
           .at[:, :D].set(z0)
           .at[:, D].set(1.0))                       # pinned "bias" column
    w1p = (jnp.zeros((Dp, Hp), jnp.float32)
           .at[:D, :Hm].set(w1.astype(jnp.float32))
           .at[D, :Hm].set(b1f))                     # b1 folded into W1
    w2p = jnp.zeros((Hp, Dp), jnp.float32).at[:Hm, :D].set(w2.astype(jnp.float32))
    b2p = jnp.zeros((1, Dp), jnp.float32).at[0, :D].set(b2f)

    # bf16 MXU operands (f32 accumulation inside the kernel).
    w1p = w1p.astype(jnp.bfloat16)
    w2p = w2p.astype(jnp.bfloat16)

    kernel = functools.partial(
        _ode_solve_kernel, rtol=float(rtol), atol=float(atol),
        n_real=B * D, max_steps=int(max_steps))

    def vmem_full(shape):
        return pl.BlockSpec(shape, lambda i, _s=len(shape): (0,) * _s)

    sol_p = pl.pallas_call(
        kernel,
        out_shape=jax.ShapeDtypeStruct((T - 1, B, Dp), jnp.float32),
        grid=(T - 1,),
        in_specs=[
            pl.BlockSpec(memory_space=pltpu.MemorySpace.SMEM),   # t (scalars)
            vmem_full((B, Dp)),                                  # z0
            vmem_full((Dp, Hp)),                                 # W1 (bf16, b1 folded)
            vmem_full((Hp, Dp)),                                 # W2 (bf16)
            vmem_full((1, Dp)),                                  # b2
        ],
        out_specs=pl.BlockSpec((None, B, Dp), lambda i: (i, 0, 0)),
        scratch_shapes=[
            pltpu.VMEM((B, Dp), jnp.float32),   # carried state z
            pltpu.SMEM((1,), jnp.float32),      # carried step size h
        ],
        compiler_params=pltpu.CompilerParams(
            dimension_semantics=("arbitrary",),
            vmem_limit_bytes=32 * 1024 * 1024),
    )(t, z0p, w1p, w2p, b2p)

    sol = sol_p[:, :, :D]
    # torchdiffeq returns z0 at t[0] as the first slice of the solution.
    return jnp.concatenate([z0[None], sol], axis=0)


# ---------------------------------------------------------------------------
# Demo / smoke test
# ---------------------------------------------------------------------------
if __name__ == "__main__":
    B, D, Hm, T = 8, 32, 64, 8   # batch, state dim, func hidden dim, time points

    key = jax.random.PRNGKey(0)
    kz, k1, k2, k3, k4 = jax.random.split(key, 5)

    z0 = jax.random.normal(kz, (B, D), dtype=jnp.float32)
    t = jnp.linspace(0.0, 1.0, T, dtype=jnp.float32)

    # Small-scale parameter init -> smooth, non-stiff dynamics.
    w1 = 0.1 * jax.random.normal(k1, (D, Hm), dtype=jnp.float32)
    b1 = 0.1 * jax.random.normal(k2, (1, Hm), dtype=jnp.float32)
    w2 = 0.1 * jax.random.normal(k3, (Hm, D), dtype=jnp.float32)
    b2 = 0.1 * jax.random.normal(k4, (1, D), dtype=jnp.float32)

    # Fused adaptive solve (single pallas_call for the whole trajectory).
    sol = adaptive_neural_ode(z0, t, w1, b1, w2, b2, rtol=1e-3, atol=1e-3)
    sol = jax.block_until_ready(sol)

    # Pure-JAX fine-step RK4 reference (ground truth within ~1e-6, f32 weights).
    def f_ref(z):
        return jnp.tanh(z @ w1 + b1) @ w2 + b2

    def rk4_reference(z0_, t_, n_sub=256):
        def seg(z, t_pair):
            t0, t1 = t_pair
            h = (t1 - t0) / n_sub
            def step(zc, _):
                kk1 = f_ref(zc)
                kk2 = f_ref(zc + 0.5 * h * kk1)
                kk3 = f_ref(zc + 0.5 * h * kk2)
                kk4 = f_ref(zc + h * kk3)
                return zc + (h / 6.0) * (kk1 + 2 * kk2 + 2 * kk3 + kk4), None
            z, _ = lax.scan(step, z, None, length=n_sub)
            return z, z
        _, zs = lax.scan(seg, z0_, (t_[:-1], t_[1:]))
        return jnp.concatenate([z0_[None], zs], axis=0)

    ref = jax.block_until_ready(rk4_reference(z0, t))

    assert sol.shape == (T, B, D)
    assert bool(jnp.all(jnp.isfinite(sol)))
    assert jnp.allclose(sol[0], z0)
    # Tolerance covers solver tolerance (1e-3) + bf16 MXU-input perturbation.
    assert jnp.allclose(sol, ref, rtol=2e-2, atol=2e-2), (
        float(jnp.max(jnp.abs(sol - ref))))

    print("KERNEL_OK")
</pallas_src>

<mosaic_0001>
module attributes {stable_mosaic.version = 11 : i64} {
  func.func @_ode_solve_kernel(%arg0: i32, %arg1: memref<8xf32, #tpu.memory_space<smem>>, %arg2: memref<8x128xf32, #tpu.memory_space<vmem>>, %arg3: memref<128x128xbf16, #tpu.memory_space<vmem>>, %arg4: memref<128x128xbf16, #tpu.memory_space<vmem>>, %arg5: memref<1x128xf32, #tpu.memory_space<vmem>>, %arg6: memref<1x8x128xf32, #tpu.memory_space<vmem>>, %arg7: memref<8x128xf32, #tpu.memory_space<vmem>>, %arg8: memref<1xf32, #tpu.memory_space<smem>>) attributes {dimension_semantics = [#tpu.dimension_semantics<arbitrary>], iteration_bounds = array<i64: 7>, scalar_prefetch = 0 : i64, scratch_operands = 2 : i64, tpu.core_type = #tpu.core_type<tc>, window_params = [{transform_indices = @transform_0, window_bounds = array<i64: 8>}, {pipeline_mode = #tpu.pipeline_mode<synchronous>, transform_indices = @transform_1, window_bounds = array<i64: 8, 128>}, {pipeline_mode = #tpu.pipeline_mode<synchronous>, transform_indices = @transform_2, window_bounds = array<i64: 128, 128>}, {pipeline_mode = #tpu.pipeline_mode<synchronous>, transform_indices = @transform_3, window_bounds = array<i64: 128, 128>}, {pipeline_mode = #tpu.pipeline_mode<synchronous>, transform_indices = @transform_4, window_bounds = array<i64: 1, 128>}, {transform_indices = @transform_5, window_bounds = array<i64: 1, 8, 128>}]} {
    %c0_i32 = arith.constant 0 : i32
    %0 = arith.cmpi eq, %arg0, %c0_i32 : i32
    %1 = arith.extui %0 : i1 to i32
    %c0_i32_0 = arith.constant 0 : i32
    %2 = arith.cmpi ne, %1, %c0_i32_0 : i32
    scf.if %2 {
      %c0_23 = arith.constant 0 : index
      %c0_24 = arith.constant 0 : index
      %30 = vector.load %arg2[%c0_23, %c0_24] : memref<8x128xf32, #tpu.memory_space<vmem>>, vector<8x128xf32>
      %c0_25 = arith.constant 0 : index
      %c0_26 = arith.constant 0 : index
      %31 = vector.load %arg7[%c0_25, %c0_26] : memref<8x128xf32, #tpu.memory_space<vmem>>, vector<8x128xf32>
      tpu.vector_store %arg7[%c0_25, %c0_26], %30 {strides = array<i32>} : memref<8x128xf32, #tpu.memory_space<vmem>>, vector<8x128xf32>,
      %c1 = arith.constant 1 : index
      %32 = memref.load %arg1[%c1] : memref<8xf32, #tpu.memory_space<smem>>
      %c0_27 = arith.constant 0 : index
      %33 = memref.load %arg1[%c0_27] : memref<8xf32, #tpu.memory_space<smem>>
      %34 = arith.subf %32, %33 : f32
      %cst_28 = arith.constant 1.000000e-01 : f32
      %35 = arith.mulf %34, %cst_28 : f32
      %c0_29 = arith.constant 0 : index
      %36 = memref.load %arg8[%c0_29] : memref<1xf32, #tpu.memory_space<smem>>
      memref.store %35, %arg8[%c0_29] : memref<1xf32, #tpu.memory_space<smem>>
    } else {
    }
    %3 = arith.index_cast %arg0 : i32 to index
    %4 = memref.load %arg1[%3] : memref<8xf32, #tpu.memory_space<smem>>
    %c1_i32 = arith.constant 1 : i32
    %5 = arith.addi %arg0, %c1_i32 : i32
    %6 = arith.index_cast %5 : i32 to index
    %7 = memref.load %arg1[%6] : memref<8xf32, #tpu.memory_space<smem>>
    %c0 = arith.constant 0 : index
    %c0_1 = arith.constant 0 : index
    %8 = vector.load %arg5[%c0, %c0_1] : memref<1x128xf32, #tpu.memory_space<vmem>>, vector<1x128xf32>
    %9 = vector.shape_cast %8 : vector<1x128xf32> to vector<1x128xf32>
    %10 = vector.broadcast %9 : vector<1x128xf32> to vector<8x128xf32>
    %11 = math.absf %7 : f32
    %cst = arith.constant 1.000000e+00 : f32
    %12 = arith.maximumf %11, %cst : f32
    %cst_2 = arith.constant 1.000000e-07 : f32
    %13 = arith.mulf %cst_2, %12 : f32
    %c0_3 = arith.constant 0 : index
    %c0_4 = arith.constant 0 : index
    %14 = vector.load %arg7[%c0_3, %c0_4] : memref<8x128xf32, #tpu.memory_space<vmem>>, vector<8x128xf32>
    %15 = arith.truncf %14 : vector<8x128xf32> to vector<8x128xbf16>
    %c0_5 = arith.constant 0 : index
    %c0_6 = arith.constant 0 : index
    %16 = vector.load %arg3[%c0_5, %c0_6] : memref<128x128xbf16, #tpu.memory_space<vmem>>, vector<128x128xbf16>
    %cst_7 = arith.constant dense<0.000000e+00> : vector<8x128xf32>
    %17 = tpu.matmul %15, %16, %cst_7 {dimension_numbers = #tpu.dot_dimension_numbers<[1], [0], [0], [1], [0, 0, 1, 1], [], []>} : vector<8x128xbf16>, vector<128x128xbf16>, vector<8x128xf32> -> vector<8x128xf32>
    %18 = math.tanh %17 : vector<8x128xf32>
    %19 = arith.truncf %18 : vector<8x128xf32> to vector<8x128xbf16>
    %c0_8 = arith.constant 0 : index
    %c0_9 = arith.constant 0 : index
    %20 = vector.load %arg4[%c0_8, %c0_9] : memref<128x128xbf16, #tpu.memory_space<vmem>>, vector<128x128xbf16>
    %cst_10 = arith.constant dense<0.000000e+00> : vector<8x128xf32>
    %21 = tpu.matmul %19, %20, %cst_10 {dimension_numbers = #tpu.dot_dimension_numbers<[1], [0], [0], [1], [0, 0, 1, 1], [], []>} : vector<8x128xbf16>, vector<128x128xbf16>, vector<8x128xf32> -> vector<8x128xf32>
    %22 = arith.addf %21, %10 : vector<8x128xf32>
    %c0_11 = arith.constant 0 : index
    %23 = memref.load %arg8[%c0_11] : memref<1xf32, #tpu.memory_space<smem>>
    %cst_12 = arith.constant 3.906250e-03 : f32
    %cst_13 = arith.constant 0.899999976 : f32
    %cst_14 = arith.constant 2.000000e-01 : f32
    %cst_15 = arith.constant 1.000000e+01 : f32
    %c0_i32_16 = arith.constant 0 : i32
    %24:5 = scf.while (%arg9 = %4, %arg10 = %23, %arg11 = %c0_i32_16, %arg12 = %14, %arg13 = %22) : (f32, f32, i32, vector<8x128xf32>, vector<8x128xf32>) -> (f32, f32, i32, vector<8x128xf32>, vector<8x128xf32>) {
      %30 = arith.subf %7, %13 : f32
      %31 = arith.cmpf olt, %arg9, %30 : f32
      %c10000_i32 = arith.constant 10000 : i32
      %32 = arith.cmpi slt, %arg11, %c10000_i32 : i32
      %33 = arith.andi %31, %32 : i1
      scf.condition(%33) %arg9, %arg10, %arg11, %arg12, %arg13 : f32, f32, i32, vector<8x128xf32>, vector<8x128xf32>
    } do {
    ^bb0(%arg9: f32, %arg10: f32, %arg11: i32, %arg12: vector<8x128xf32>, %arg13: vector<8x128xf32>):
      %30 = arith.subf %7, %arg9 : f32
      %31 = arith.minimumf %arg10, %30 : f32
      %32 = vector.broadcast %31 : f32 to vector<8x128xf32>
      %33 = arith.mulf %32, %arg13 : vector<8x128xf32>
      %cst_23 = arith.constant 2.000000e-01 : f32
      %34 = vector.broadcast %cst_23 : f32 to vector<8x128xf32>
      %35 = arith.mulf %34, %33 : vector<8x128xf32>
      %36 = arith.addf %arg12, %35 : vector<8x128xf32>
      %37 = arith.truncf %36 : vector<8x128xf32> to vector<8x128xbf16>
      %c0_24 = arith.constant 0 : index
      %c0_25 = arith.constant 0 : index
      %38 = vector.load %arg3[%c0_24, %c0_25] : memref<128x128xbf16, #tpu.memory_space<vmem>>, vector<128x128xbf16>
      %cst_26 = arith.constant dense<0.000000e+00> : vector<8x128xf32>
      %39 = tpu.matmul %37, %38, %cst_26 {dimension_numbers = #tpu.dot_dimension_numbers<[1], [0], [0], [1], [0, 0, 1, 1], [], []>} : vector<8x128xbf16>, vector<128x128xbf16>, vector<8x128xf32> -> vector<8x128xf32>
      %40 = math.tanh %39 : vector<8x128xf32>
      %41 = arith.truncf %40 : vector<8x128xf32> to vector<8x128xbf16>
      %c0_27 = arith.constant 0 : index
      %c0_28 = arith.constant 0 : index
      %42 = vector.load %arg4[%c0_27, %c0_28] : memref<128x128xbf16, #tpu.memory_space<vmem>>, vector<128x128xbf16>
      %cst_29 = arith.constant dense<0.000000e+00> : vector<8x128xf32>
      %43 = tpu.matmul %41, %42, %cst_29 {dimension_numbers = #tpu.dot_dimension_numbers<[1], [0], [0], [1], [0, 0, 1, 1], [], []>} : vector<8x128xbf16>, vector<128x128xbf16>, vector<8x128xf32> -> vector<8x128xf32>
      %44 = arith.addf %43, %10 : vector<8x128xf32>
      %45 = vector.broadcast %31 : f32 to vector<8x128xf32>
      %46 = arith.mulf %45, %44 : vector<8x128xf32>
      %cst_30 = arith.constant 7.500000e-02 : f32
      %47 = vector.broadcast %cst_30 : f32 to vector<8x128xf32>
      %48 = arith.mulf %47, %33 : vector<8x128xf32>
      %cst_31 = arith.constant 2.250000e-01 : f32
      %49 = vector.broadcast %cst_31 : f32 to vector<8x128xf32>
      %50 = arith.mulf %49, %46 : vector<8x128xf32>
      %51 = arith.addf %48, %50 : vector<8x128xf32>
      %52 = arith.addf %arg12, %51 : vector<8x128xf32>
      %53 = arith.truncf %52 : vector<8x128xf32> to vector<8x128xbf16>
      %c0_32 = arith.constant 0 : index
      %c0_33 = arith.constant 0 : index
      %54 = vector.load %arg3[%c0_32, %c0_33] : memref<128x128xbf16, #tpu.memory_space<vmem>>, vector<128x128xbf16>
      %cst_34 = arith.constant dense<0.000000e+00> : vector<8x128xf32>
      %55 = tpu.matmul %53, %54, %cst_34 {dimension_numbers = #tpu.dot_dimension_numbers<[1], [0], [0], [1], [0, 0, 1, 1], [], []>} : vector<8x128xbf16>, vector<128x128xbf16>, vector<8x128xf32> -> vector<8x128xf32>
      %56 = math.tanh %55 : vector<8x128xf32>
      %57 = arith.truncf %56 : vector<8x128xf32> to vector<8x128xbf16>
      %c0_35 = arith.constant 0 : index
      %c0_36 = arith.constant 0 : index
      %58 = vector.load %arg4[%c0_35, %c0_36] : memref<128x128xbf16, #tpu.memory_space<vmem>>, vector<128x128xbf16>
      %cst_37 = arith.constant dense<0.000000e+00> : vector<8x128xf32>
      %59 = tpu.matmul %57, %58, %cst_37 {dimension_numbers = #tpu.dot_dimension_numbers<[1], [0], [0], [1], [0, 0, 1, 1], [], []>} : vector<8x128xbf16>, vector<128x128xbf16>, vector<8x128xf32> -> vector<8x128xf32>
      %60 = arith.addf %59, %10 : vector<8x128xf32>
      %61 = vector.broadcast %31 : f32 to vector<8x128xf32>
      %62 = arith.mulf %61, %60 : vector<8x128xf32>
      %cst_38 = arith.constant 0.977777779 : f32
      %63 = vector.broadcast %cst_38 : f32 to vector<8x128xf32>
      %64 = arith.mulf %63, %33 : vector<8x128xf32>
      %cst_39 = arith.constant -3.73333335 : f32
      %65 = vector.broadcast %cst_39 : f32 to vector<8x128xf32>
      %66 = arith.mulf %65, %46 : vector<8x128xf32>
      %67 = arith.addf %64, %66 : vector<8x128xf32>
      %cst_40 = arith.constant 3.55555558 : f32
      %68 = vector.broadcast %cst_40 : f32 to vector<8x128xf32>
      %69 = arith.mulf %68, %62 : vector<8x128xf32>
      %70 = arith.addf %67, %69 : vector<8x128xf32>
      %71 = arith.addf %arg12, %70 : vector<8x128xf32>
      %72 = arith.truncf %71 : vector<8x128xf32> to vector<8x128xbf16>
      %c0_41 = arith.constant 0 : index
      %c0_42 = arith.constant 0 : index
      %73 = vector.load %arg3[%c0_41, %c0_42] : memref<128x128xbf16, #tpu.memory_space<vmem>>, vector<128x128xbf16>
      %cst_43 = arith.constant dense<0.000000e+00> : vector<8x128xf32>
      %74 = tpu.matmul %72, %73, %cst_43 {dimension_numbers = #tpu.dot_dimension_numbers<[1], [0], [0], [1], [0, 0, 1, 1], [], []>} : vector<8x128xbf16>, vector<128x128xbf16>, vector<8x128xf32> -> vector<8x128xf32>
      %75 = math.tanh %74 : vector<8x128xf32>
      %76 = arith.truncf %75 : vector<8x128xf32> to vector<8x128xbf16>
      %c0_44 = arith.constant 0 : index
      %c0_45 = arith.constant 0 : index
      %77 = vector.load %arg4[%c0_44, %c0_45] : memref<128x128xbf16, #tpu.memory_space<vmem>>, vector<128x128xbf16>
      %cst_46 = arith.constant dense<0.000000e+00> : vector<8x128xf32>
      %78 = tpu.matmul %76, %77, %cst_46 {dimension_numbers = #tpu.dot_dimension_numbers<[1], [0], [0], [1], [0, 0, 1, 1], [], []>} : vector<8x128xbf16>, vector<128x128xbf16>, vector<8x128xf32> -> vector<8x128xf32>
      %79 = arith.addf %78, %10 : vector<8x128xf32>
      %80 = vector.broadcast %31 : f32 to vector<8x128xf32>
      %81 = arith.mulf %80, %79 : vector<8x128xf32>
      %cst_47 = arith.constant 2.95259857 : f32
      %82 = vector.broadcast %cst_47 : f32 to vector<8x128xf32>
      %83 = arith.mulf %82, %33 : vector<8x128xf32>
      %cst_48 = arith.constant -11.5957937 : f32
      %84 = vector.broadcast %cst_48 : f32 to vector<8x128xf32>
      %85 = arith.mulf %84, %46 : vector<8x128xf32>
      %86 = arith.addf %83, %85 : vector<8x128xf32>
      %cst_49 = arith.constant 9.82289314 : f32
      %87 = vector.broadcast %cst_49 : f32 to vector<8x128xf32>
      %88 = arith.mulf %87, %62 : vector<8x128xf32>
      %89 = arith.addf %86, %88 : vector<8x128xf32>
      %cst_50 = arith.constant -0.290809333 : f32
      %90 = vector.broadcast %cst_50 : f32 to vector<8x128xf32>
      %91 = arith.mulf %90, %81 : vector<8x128xf32>
      %92 = arith.addf %89, %91 : vector<8x128xf32>
      %93 = arith.addf %arg12, %92 : vector<8x128xf32>
      %94 = arith.truncf %93 : vector<8x128xf32> to vector<8x128xbf16>
      %c0_51 = arith.constant 0 : index
      %c0_52 = arith.constant 0 : index
      %95 = vector.load %arg3[%c0_51, %c0_52] : memref<128x128xbf16, #tpu.memory_space<vmem>>, vector<128x128xbf16>
      %cst_53 = arith.constant dense<0.000000e+00> : vector<8x128xf32>
      %96 = tpu.matmul %94, %95, %cst_53 {dimension_numbers = #tpu.dot_dimension_numbers<[1], [0], [0], [1], [0, 0, 1, 1], [], []>} : vector<8x128xbf16>, vector<128x128xbf16>, vector<8x128xf32> -> vector<8x128xf32>
      %97 = math.tanh %96 : vector<8x128xf32>
      %98 = arith.truncf %97 : vector<8x128xf32> to vector<8x128xbf16>
      %c0_54 = arith.constant 0 : index
      %c0_55 = arith.constant 0 : index
      %99 = vector.load %arg4[%c0_54, %c0_55] : memref<128x128xbf16, #tpu.memory_space<vmem>>, vector<128x128xbf16>
      %cst_56 = arith.constant dense<0.000000e+00> : vector<8x128xf32>
      %100 = tpu.matmul %98, %99, %cst_56 {dimension_numbers = #tpu.dot_dimension_numbers<[1], [0], [0], [1], [0, 0, 1, 1], [], []>} : vector<8x128xbf16>, vector<128x128xbf16>, vector<8x128xf32> -> vector<8x128xf32>
      %101 = arith.addf %100, %10 : vector<8x128xf32>
      %102 = vector.broadcast %31 : f32 to vector<8x128xf32>
      %103 = arith.mulf %102, %101 : vector<8x128xf32>
      %cst_57 = arith.constant 2.84627533 : f32
      %104 = vector.broadcast %cst_57 : f32 to vector<8x128xf32>
      %105 = arith.mulf %104, %33 : vector<8x128xf32>
      %cst_58 = arith.constant -10.757576 : f32
      %106 = vector.broadcast %cst_58 : f32 to vector<8x128xf32>
      %107 = arith.mulf %106, %46 : vector<8x128xf32>
      %108 = arith.addf %105, %107 : vector<8x128xf32>
      %cst_59 = arith.constant 8.90642261 : f32
      %109 = vector.broadcast %cst_59 : f32 to vector<8x128xf32>
      %110 = arith.mulf %109, %62 : vector<8x128xf32>
      %111 = arith.addf %108, %110 : vector<8x128xf32>
      %cst_60 = arith.constant 0.278409094 : f32
      %112 = vector.broadcast %cst_60 : f32 to vector<8x128xf32>
      %113 = arith.mulf %112, %81 : vector<8x128xf32>
      %114 = arith.addf %111, %113 : vector<8x128xf32>
      %cst_61 = arith.constant -0.273531318 : f32
      %115 = vector.broadcast %cst_61 : f32 to vector<8x128xf32>
      %116 = arith.mulf %115, %103 : vector<8x128xf32>
      %117 = arith.addf %114, %116 : vector<8x128xf32>
      %118 = arith.addf %arg12, %117 : vector<8x128xf32>
      %119 = arith.truncf %118 : vector<8x128xf32> to vector<8x128xbf16>
      %c0_62 = arith.constant 0 : index
      %c0_63 = arith.constant 0 : index
      %120 = vector.load %arg3[%c0_62, %c0_63] : memref<128x128xbf16, #tpu.memory_space<vmem>>, vector<128x128xbf16>
      %cst_64 = arith.constant dense<0.000000e+00> : vector<8x128xf32>
      %121 = tpu.matmul %119, %120, %cst_64 {dimension_numbers = #tpu.dot_dimension_numbers<[1], [0], [0], [1], [0, 0, 1, 1], [], []>} : vector<8x128xbf16>, vector<128x128xbf16>, vector<8x128xf32> -> vector<8x128xf32>
      %122 = math.tanh %121 : vector<8x128xf32>
      %123 = arith.truncf %122 : vector<8x128xf32> to vector<8x128xbf16>
      %c0_65 = arith.constant 0 : index
      %c0_66 = arith.constant 0 : index
      %124 = vector.load %arg4[%c0_65, %c0_66] : memref<128x128xbf16, #tpu.memory_space<vmem>>, vector<128x128xbf16>
      %cst_67 = arith.constant dense<0.000000e+00> : vector<8x128xf32>
      %125 = tpu.matmul %123, %124, %cst_67 {dimension_numbers = #tpu.dot_dimension_numbers<[1], [0], [0], [1], [0, 0, 1, 1], [], []>} : vector<8x128xbf16>, vector<128x128xbf16>, vector<8x128xf32> -> vector<8x128xf32>
      %126 = arith.addf %125, %10 : vector<8x128xf32>
      %127 = vector.broadcast %31 : f32 to vector<8x128xf32>
      %128 = arith.mulf %127, %126 : vector<8x128xf32>
      %cst_68 = arith.constant 0.0911458358 : f32
      %129 = vector.broadcast %cst_68 : f32 to vector<8x128xf32>
      %130 = arith.mulf %129, %33 : vector<8x128xf32>
      %cst_69 = arith.constant 0.449236304 : f32
      %131 = vector.broadcast %cst_69 : f32 to vector<8x128xf32>
      %132 = arith.mulf %131, %62 : vector<8x128xf32>
      %133 = arith.addf %130, %132 : vector<8x128xf32>
      %cst_70 = arith.constant 0.651041686 : f32
      %134 = vector.broadcast %cst_70 : f32 to vector<8x128xf32>
      %135 = arith.mulf %134, %81 : vector<8x128xf32>
      %136 = arith.addf %133, %135 : vector<8x128xf32>
      %cst_71 = arith.constant -0.322376192 : f32
      %137 = vector.broadcast %cst_71 : f32 to vector<8x128xf32>
      %138 = arith.mulf %137, %103 : vector<8x128xf32>
      %139 = arith.addf %136, %138 : vector<8x128xf32>
      %cst_72 = arith.constant 0.130952388 : f32
      %140 = vector.broadcast %cst_72 : f32 to vector<8x128xf32>
      %141 = arith.mulf %140, %128 : vector<8x128xf32>
      %142 = arith.addf %139, %141 : vector<8x128xf32>
      %143 = arith.addf %arg12, %142 : vector<8x128xf32>
      %144 = arith.truncf %143 : vector<8x128xf32> to vector<8x128xbf16>
      %c0_73 = arith.constant 0 : index
      %c0_74 = arith.constant 0 : index
      %145 = vector.load %arg3[%c0_73, %c0_74] : memref<128x128xbf16, #tpu.memory_space<vmem>>, vector<128x128xbf16>
      %cst_75 = arith.constant dense<0.000000e+00> : vector<8x128xf32>
      %146 = tpu.matmul %144, %145, %cst_75 {dimension_numbers = #tpu.dot_dimension_numbers<[1], [0], [0], [1], [0, 0, 1, 1], [], []>} : vector<8x128xbf16>, vector<128x128xbf16>, vector<8x128xf32> -> vector<8x128xf32>
      %147 = math.tanh %146 : vector<8x128xf32>
      %148 = arith.truncf %147 : vector<8x128xf32> to vector<8x128xbf16>
      %c0_76 = arith.constant 0 : index
      %c0_77 = arith.constant 0 : index
      %149 = vector.load %arg4[%c0_76, %c0_77] : memref<128x128xbf16, #tpu.memory_space<vmem>>, vector<128x128xbf16>
      %cst_78 = arith.constant dense<0.000000e+00> : vector<8x128xf32>
      %150 = tpu.matmul %148, %149, %cst_78 {dimension_numbers = #tpu.dot_dimension_numbers<[1], [0], [0], [1], [0, 0, 1, 1], [], []>} : vector<8x128xbf16>, vector<128x128xbf16>, vector<8x128xf32> -> vector<8x128xf32>
      %151 = arith.addf %150, %10 : vector<8x128xf32>
      %152 = vector.broadcast %31 : f32 to vector<8x128xf32>
      %153 = arith.mulf %152, %151 : vector<8x128xf32>
      %cst_79 = arith.constant 0.00123263884 : f32
      %154 = vector.broadcast %cst_79 : f32 to vector<8x128xf32>
      %155 = arith.mulf %154, %33 : vector<8x128xf32>
      %cst_80 = arith.constant -0.00425277045 : f32
      %156 = vector.broadcast %cst_80 : f32 to vector<8x128xf32>
      %157 = arith.mulf %156, %62 : vector<8x128xf32>
      %158 = arith.addf %155, %157 : vector<8x128xf32>
      %cst_81 = arith.constant 0.0369791649 : f32
      %159 = vector.broadcast %cst_81 : f32 to vector<8x128xf32>
      %160 = arith.mulf %159, %81 : vector<8x128xf32>
      %161 = arith.addf %158, %160 : vector<8x128xf32>
      %cst_82 = arith.constant -5.086380e-02 : f32
      %162 = vector.broadcast %cst_82 : f32 to vector<8x128xf32>
      %163 = arith.mulf %162, %103 : vector<8x128xf32>
      %164 = arith.addf %161, %163 : vector<8x128xf32>
      %cst_83 = arith.constant 0.0419047624 : f32
      %165 = vector.broadcast %cst_83 : f32 to vector<8x128xf32>
      %166 = arith.mulf %165, %128 : vector<8x128xf32>
      %167 = arith.addf %164, %166 : vector<8x128xf32>
      %cst_84 = arith.constant -2.500000e-02 : f32
      %168 = vector.broadcast %cst_84 : f32 to vector<8x128xf32>
      %169 = arith.mulf %168, %153 : vector<8x128xf32>
      %170 = arith.addf %167, %169 : vector<8x128xf32>
      %171 = math.absf %arg12 : vector<8x128xf32>
      %172 = math.absf %143 : vector<8x128xf32>
      %173 = arith.maximumf %171, %172 : vector<8x128xf32>
      %cst_85 = arith.constant 1.000000e-03 : f32
      %174 = vector.broadcast %cst_85 : f32 to vector<8x128xf32>
      %175 = arith.mulf %174, %173 : vector<8x128xf32>
      %cst_86 = arith.constant 1.000000e-03 : f32
      %176 = vector.broadcast %cst_86 : f32 to vector<8x128xf32>
      %177 = arith.addf %176, %175 : vector<8x128xf32>
      %178 = tpu.reciprocal %177 {approx = true} : vector<8x128xf32> -> vector<8x128xf32>
      %179 = arith.mulf %170, %178 : vector<8x128xf32>
      %180 = arith.mulf %179, %179 : vector<8x128xf32>
      %181 = vector.shape_cast %180 : vector<8x128xf32> to vector<1x8x128xf32>
      %cst_87 = arith.constant dense<0.000000e+00> : vector<1xf32>
      %182 = vector.multi_reduction <add>, %181, %cst_87 [1, 2] : vector<1x8x128xf32> to vector<1xf32>
      %183 = vector.shape_cast %182 : vector<1xf32> to vector<1x1x1xf32>
      %184 = vector.extract %183[0, 0, 0] : f32 from vector<1x1x1xf32>
      %185 = arith.mulf %184, %cst_12 : f32
      %cst_88 = arith.constant 0.000000e+00 : f32
      %186 = arith.cmpf oge, %185, %cst_88 : f32
      %cst_89 = arith.constant 1.000000e+30 : f32
      %187 = arith.cmpf olt, %185, %cst_89 : f32
      %188 = arith.andi %186, %187 : i1
      %cst_90 = arith.constant 1.000000e+00 : f32
      %189 = arith.cmpf ole, %185, %cst_90 : f32
      %190 = arith.andi %188, %189 : i1
      %191 = vector.broadcast %185 : f32 to vector<1x1xf32>
      %cst_91 = arith.constant 9.99999968E-21 : f32
      %192 = vector.broadcast %cst_91 : f32 to vector<1x1xf32>
      %193 = arith.maximumf %191, %192 : vector<1x1xf32>
      %194 = math.log %193 : vector<1x1xf32>
      %cst_92 = arith.constant -1.000000e-01 : f32
      %195 = vector.broadcast %cst_92 : f32 to vector<1x1xf32>
      %196 = arith.mulf %195, %194 : vector<1x1xf32>
      %197 = math.exp %196 : vector<1x1xf32>
      %198 = vector.broadcast %cst_13 : f32 to vector<1x1xf32>
      %199 = arith.mulf %198, %197 : vector<1x1xf32>
      %200 = vector.broadcast %cst_14 : f32 to vector<1x1xf32>
      %201 = arith.maximumf %200, %199 : vector<1x1xf32>
      %202 = vector.broadcast %cst_15 : f32 to vector<1x1xf32>
      %203 = arith.minimumf %202, %201 : vector<1x1xf32>
      %204 = vector.shape_cast %203 : vector<1x1xf32> to vector<1x1x1xf32>
      %cst_93 = arith.constant dense<0.000000e+00> : vector<1xf32>
      %205 = vector.multi_reduction <add>, %204, %cst_93 [1, 2] : vector<1x1x1xf32> to vector<1xf32>
      %206 = vector.shape_cast %205 : vector<1xf32> to vector<1x1x1xf32>
      %207 = vector.extract %206[0, 0, 0] : f32 from vector<1x1x1xf32>
      %208 = arith.select %188, %207, %cst_14 : f32
      %209 = arith.select %190, %143, %arg12 : vector<8x128xf32>
      %210 = arith.select %190, %151, %arg13 : vector<8x128xf32>
      %211 = arith.addf %arg9, %31 : f32
      %212 = arith.select %190, %211, %arg9 : f32
      %213 = arith.mulf %31, %208 : f32
      %214 = arith.cmpf olt, %31, %arg10 : f32
      %215 = arith.andi %190, %214 : i1
      %216 = arith.maximumf %arg10, %213 : f32
      %217 = arith.select %215, %216, %213 : f32
      %c1_i32_94 = arith.constant 1 : i32
      %218 = arith.addi %arg11, %c1_i32_94 : i32
      scf.yield %212, %217, %218, %209, %210 : f32, f32, i32, vector<8x128xf32>, vector<8x128xf32>
    }
    %c0_17 = arith.constant 0 : index
    %25 = memref.load %arg8[%c0_17] : memref<1xf32, #tpu.memory_space<smem>>
    memref.store %24#1, %arg8[%c0_17] : memref<1xf32, #tpu.memory_space<smem>>
    %c0_18 = arith.constant 0 : index
    %c0_19 = arith.constant 0 : index
    %26 = vector.load %arg7[%c0_18, %c0_19] : memref<8x128xf32, #tpu.memory_space<vmem>>, vector<8x128xf32>
    tpu.vector_store %arg7[%c0_18, %c0_19], %24#3 {strides = array<i32>} : memref<8x128xf32, #tpu.memory_space<vmem>>, vector<8x128xf32>,
    %c0_20 = arith.constant 0 : index
    %c0_21 = arith.constant 0 : index
    %c0_22 = arith.constant 0 : index
    %27 = vector.load %arg6[%c0_20, %c0_21, %c0_22] : memref<1x8x128xf32, #tpu.memory_space<vmem>>, vector<1x8x128xf32>
    %28 = vector.shape_cast %27 : vector<1x8x128xf32> to vector<8x128xf32>
    %29 = vector.shape_cast %24#3 : vector<8x128xf32> to vector<1x8x128xf32>
    tpu.vector_store %arg6[%c0_20, %c0_21, %c0_22], %29 {strides = array<i32>} : memref<1x8x128xf32, #tpu.memory_space<vmem>>, vector<1x8x128xf32>,
    return
  }
  func.func @transform_0(%arg0: i32) -> i32 {
    %c0_i32 = arith.constant 0 : i32
    %c0_i32_0 = arith.constant 0 : i32
    return %c0_i32 : i32
  }
  func.func @transform_1(%arg0: i32) -> (i32, i32) {
    %c0_i32 = arith.constant 0 : i32
    %c0_i32_0 = arith.constant 0 : i32
    %c0_i32_1 = arith.constant 0 : i32
    return %c0_i32, %c0_i32_0 : i32, i32
  }
  func.func @transform_2(%arg0: i32) -> (i32, i32) {
    %c0_i32 = arith.constant 0 : i32
    %c0_i32_0 = arith.constant 0 : i32
    %c0_i32_1 = arith.constant 0 : i32
    return %c0_i32, %c0_i32_0 : i32, i32
  }
  func.func @transform_3(%arg0: i32) -> (i32, i32) {
    %c0_i32 = arith.constant 0 : i32
    %c0_i32_0 = arith.constant 0 : i32
    %c0_i32_1 = arith.constant 0 : i32
    return %c0_i32, %c0_i32_0 : i32, i32
  }
  func.func @transform_4(%arg0: i32) -> (i32, i32) {
    %c0_i32 = arith.constant 0 : i32
    %c0_i32_0 = arith.constant 0 : i32
    %c0_i32_1 = arith.constant 0 : i32
    return %c0_i32, %c0_i32_0 : i32, i32
  }
  func.func @transform_5(%arg0: i32) -> (i32, i32, i32) {
    %c0_i32 = arith.constant 0 : i32
    %c0_i32_0 = arith.constant 0 : i32
    %c0_i32_1 = arith.constant 0 : i32
    return %arg0, %c0_i32, %c0_i32_0 : i32, i32, i32
  }
}

</mosaic_0001>

<llo_original>
// kernel: adaptive_neural_ode.1
$region0: #{adaptive_neural_ode.1}
  #allocation0 [shape = 'u32[]', space=smem, size = 0x4, offset = 0x4, fixed_abs, tag = 'smem constant byte address 0x4 - core index']
  #allocation1 [shape = 'u32[72,128]{1,0:T(1,128)}', space=vmem, size = 0x9000, scoped, tag = 'internal scratch']
  #allocation2 [shape = 'f32[8,128]{1,0:T(8,128)}', space=vmem, size = 0x1000, scoped, tag = 'scratch operand']
  #allocation3 [shape = 'f32[1]{0:T(128)}', space=smem, size = 0x200, scoped, tag = 'scratch operand']
  %s0 = inlined_call_operand.vmem [shape: f32[8], index: 0, kind: input, shape index: {}]
  %s1 = inlined_call_operand.vmem [shape: f32[8,128], index: 1, kind: input, shape index: {}]
  %s2 = inlined_call_operand.vmem [shape: bf16[128,128], index: 2, kind: input, shape index: {}]
  %s3 = inlined_call_operand.vmem [shape: bf16[128,128], index: 3, kind: input, shape index: {}]
  %s4 = inlined_call_operand.vmem [shape: f32[1,128], index: 4, kind: input, shape index: {}]
  %s5 = inlined_call_operand.vmem [shape: f32[7,8,128], index: 5, kind: output, shape index: {}]
  %s6 = sld [smem:[#allocation0]]
  $region68: #{adaptive_neural_ode.1} parent=0
    _
  %s8 = ssub.s32 1, %s6
  %s9 = scalar_select 0, %s8, %s6
  $region1: #{adaptive_neural_ode.1} parent=0
    #allocation4 [shape = 'u8[512]{0}', space=smem, size = 0x200, scoped, tag = 'input window, operand 0, single buffered']
    #allocation5 [shape = 's32[2]{0}', space=sflag, size = 0x8, scoped, tag = 'scoped memory for adaptive_neural_ode.1']
    %10 = vsyncpa [#allocation5], 0
    loop: start=0, step=1, limit=9
    $region2: #{adaptive_neural_ode.1} parent=1 // loop_pre_header
      _
    $region3: #{adaptive_neural_ode.1} parent=1 // loop_header
      %s12 = sphi 0, %s16
      %p13 = scmp.ge.s32.totalorder %s12, 9
      %s20 = sphi 0, %s20
      %s22 = sphi 0, %s20
      %s23 = sphi 0, %s22
      %s37 = sphi 0, %s23
      %s41 = sphi 0, %s41
      %s43 = sphi 0, %s41
      %s44 = sphi 0, %s43
      %s58 = sphi 0, %s44
      %s62 = sphi 0, %s62
      %s64 = sphi 0, %s62
      %s65 = sphi 0, %s64
      %s79 = sphi 0, %s65
      %s83 = sphi 0, %s83
      %s85 = sphi 0, %s83
      %s86 = sphi 0, %s85
      %s100 = sphi 0, %s86
      %s104 = sphi 0, %s104
      %s106 = sphi 0, %s104
      %s107 = sphi 0, %s106
      %s121 = sphi 0, %s107
      %s127 = sphi 0, %s129
      %s130 = sphi 0, %s127
      %s131 = sphi 0, %s130
      %s147 = sphi 0, %s131
    $region4: #{adaptive_neural_ode.1} parent=1 // loop_header_branch
      %15 = sbr.rel (%p13) target = $region8
    $region5: #{adaptive_neural_ode.1} parent=1 // loop_body
      %s17 = ssub.s32 %s12, 1
      %s18 = ssub.s32 %s12, 2
      %s19 = sadd.s32 %s12, 1
      %s21 = sadd.s32 %s20, 1
      %p24 = scmp.eq.s32.totalorder %s12, 6
      %p25 = scmp.ne.s32.totalorder %s20, %s22
      %p26 = scmp.eq.s32.totalorder %s12, 0
      %p27 = por %p25, %p26
      %p28 = scmp.ne.s32.totalorder %s20, %s22
      %p29 = scmp.eq.s32.totalorder %s17, 6
      %p30 = por %p28, %p29
      %p31 = scmp.ne.s32.totalorder %s22, %s23
      %p32 = scmp.eq.s32.totalorder %s17, 0
      %p33 = por %p31, %p32
      %p34 = scmp.ne.s32.totalorder %s22, %s23
      %p35 = scmp.eq.s32.totalorder %s18, 6
      %p36 = por %p34, %p35
      %p38 = scmp.ne.s32.totalorder %s23, %s37
      %p39 = scmp.eq.s32.totalorder %s18, 0
      %p40 = por %p38, %p39
      %s42 = sadd.s32 %s41, 1
      %p45 = scmp.eq.s32.totalorder %s12, 6
      %p46 = scmp.ne.s32.totalorder %s41, %s43
      %p47 = scmp.eq.s32.totalorder %s12, 0
      %p48 = por %p46, %p47
      %p49 = scmp.ne.s32.totalorder %s41, %s43
      %p50 = scmp.eq.s32.totalorder %s17, 6
      %p51 = por %p49, %p50
      %p52 = scmp.ne.s32.totalorder %s43, %s44
      %p53 = scmp.eq.s32.totalorder %s17, 0
      %p54 = por %p52, %p53
      %p55 = scmp.ne.s32.totalorder %s43, %s44
      %p56 = scmp.eq.s32.totalorder %s18, 6
      %p57 = por %p55, %p56
      %p59 = scmp.ne.s32.totalorder %s44, %s58
      %p60 = scmp.eq.s32.totalorder %s18, 0
      %p61 = por %p59, %p60
      %s63 = sadd.s32 %s62, 1
      %p66 = scmp.eq.s32.totalorder %s12, 6
      %p67 = scmp.ne.s32.totalorder %s62, %s64
      %p68 = scmp.eq.s32.totalorder %s12, 0
      %p69 = por %p67, %p68
      %p70 = scmp.ne.s32.totalorder %s62, %s64
      %p71 = scmp.eq.s32.totalorder %s17, 6
      %p72 = por %p70, %p71
      %p73 = scmp.ne.s32.totalorder %s64, %s65
      %p74 = scmp.eq.s32.totalorder %s17, 0
      %p75 = por %p73, %p74
      %p76 = scmp.ne.s32.totalorder %s64, %s65
      %p77 = scmp.eq.s32.totalorder %s18, 6
      %p78 = por %p76, %p77
      %p80 = scmp.ne.s32.totalorder %s65, %s79
      %p81 = scmp.eq.s32.totalorder %s18, 0
      %p82 = por %p80, %p81
      %s84 = sadd.s32 %s83, 1
      %p87 = scmp.eq.s32.totalorder %s12, 6
      %p88 = scmp.ne.s32.totalorder %s83, %s85
      %p89 = scmp.eq.s32.totalorder %s12, 0
      %p90 = por %p88, %p89
      %p91 = scmp.ne.s32.totalorder %s83, %s85
      %p92 = scmp.eq.s32.totalorder %s17, 6
      %p93 = por %p91, %p92
      %p94 = scmp.ne.s32.totalorder %s85, %s86
      %p95 = scmp.eq.s32.totalorder %s17, 0
      %p96 = por %p94, %p95
      %p97 = scmp.ne.s32.totalorder %s85, %s86
      %p98 = scmp.eq.s32.totalorder %s18, 6
      %p99 = por %p97, %p98
      %p101 = scmp.ne.s32.totalorder %s86, %s100
      %p102 = scmp.eq.s32.totalorder %s18, 0
      %p103 = por %p101, %p102
      %s105 = sadd.s32 %s104, 1
      %p108 = scmp.eq.s32.totalorder %s12, 6
      %p109 = scmp.ne.s32.totalorder %s104, %s106
      %p110 = scmp.eq.s32.totalorder %s12, 0
      %p111 = por %p109, %p110
      %p112 = scmp.ne.s32.totalorder %s104, %s106
      %p113 = scmp.eq.s32.totalorder %s17, 6
      %p114 = por %p112, %p113
      %p115 = scmp.ne.s32.totalorder %s106, %s107
      %p116 = scmp.eq.s32.totalorder %s17, 0
      %p117 = por %p115, %p116
      %p118 = scmp.ne.s32.totalorder %s106, %s107
      %p119 = scmp.eq.s32.totalorder %s18, 6
      %p120 = por %p118, %p119
      %p122 = scmp.ne.s32.totalorder %s107, %s121
      %p123 = scmp.eq.s32.totalorder %s18, 0
      %p124 = por %p122, %p123
      %s125 = ssub.s32 %s12, %s19
      %p126 = scmp.eq.s32.totalorder %s125, 0
      %s128 = sadd.s32 %s127, 1
      %s129 = scalar_select %p126, %s127, %s128
      %p132 = pneg %p126
      %p133 = scmp.eq.s32.totalorder %s12, 6
      %p134 = por %p132, %p133
      %p135 = scmp.ne.s32.totalorder %s127, %s130
      %p136 = scmp.eq.s32.totalorder %s12, 0
      %p137 = por %p135, %p136
      %p138 = scmp.ne.s32.totalorder %s127, %s130
      %p139 = scmp.eq.s32.totalorder %s17, 6
      %p140 = por %p138, %p139
      %p141 = scmp.ne.s32.totalorder %s130, %s131
      %p142 = scmp.eq.s32.totalorder %s17, 0
      %p143 = por %p141, %p142
      %p144 = scmp.ne.s32.totalorder %s130, %s131
      %p145 = scmp.eq.s32.totalorder %s18, 6
      %p146 = por %p144, %p145
      %p148 = scmp.ne.s32.totalorder %s131, %s147
      %p149 = scmp.eq.s32.totalorder %s18, 0
      %p150 = por %p148, %p149
      %p151 = scmp.le.s32.totalorder 1, %s12
      %p152 = scmp.lt.s32.totalorder %s12, 8
      %p153 = pnand %p151, %p152
      %p154 = pneg %p153
      // Predicated region
      $region9: #{adaptive_neural_ode.1} parent=5 // pred_check
        _
      $region10: #{adaptive_neural_ode.1} parent=5 // pred_check_branch
        %156 = sbr.rel (%p153) target = $region12
      $region11: #{adaptive_neural_ode.1} parent=5 // pred_region
        %s157 = ssub.s32 %s12, 1
        // Predicated region
        $region13: #{adaptive_neural_ode.1} parent=11 // pred_check
          %p158 = pneg %p33
        $region14: #{adaptive_neural_ode.1} parent=11 // pred_check_branch
          %160 = sbr.rel (%p158) target = $region16
        $region15: #{adaptive_neural_ode.1} parent=11 // pred_region
          %162 = vsyncadd [#allocation5], 0
          %s164 = sshll.u32 %s0, 4
          %s165 = int_to_ptr.vmem [resolvable:$true] %s164
          %167 = dma.vmem_to_smem %s165, 16, [#allocation4], [#allocation5]
        $region16: #{adaptive_neural_ode.1} parent=11 // pred_fallthru
          _
        // Predicated region
        $region17: #{adaptive_neural_ode.1} parent=11 // pred_check
          %p168 = pneg %p54
        $region18: #{adaptive_neural_ode.1} parent=11 // pred_check_branch
          %170 = sbr.rel (%p168) target = $region20
        $region19: #{adaptive_neural_ode.1} parent=11 // pred_region
          _
        $region20: #{adaptive_neural_ode.1} parent=11 // pred_fallthru
          _
        // Predicated region
        $region21: #{adaptive_neural_ode.1} parent=11 // pred_check
          %p171 = pneg %p75
        $region22: #{adaptive_neural_ode.1} parent=11 // pred_check_branch
          %173 = sbr.rel (%p171) target = $region24
        $region23: #{adaptive_neural_ode.1} parent=11 // pred_region
          _
        $region24: #{adaptive_neural_ode.1} parent=11 // pred_fallthru
          _
        // Predicated region
        $region25: #{adaptive_neural_ode.1} parent=11 // pred_check
          %p174 = pneg %p96
        $region26: #{adaptive_neural_ode.1} parent=11 // pred_check_branch
          %176 = sbr.rel (%p174) target = $region28
        $region27: #{adaptive_neural_ode.1} parent=11 // pred_region
          _
        $region28: #{adaptive_neural_ode.1} parent=11 // pred_fallthru
          _
        // Predicated region
        $region29: #{adaptive_neural_ode.1} parent=11 // pred_check
          %p177 = pneg %p117
        $region30: #{adaptive_neural_ode.1} parent=11 // pred_check_branch
          %179 = sbr.rel (%p177) target = $region32
        $region31: #{adaptive_neural_ode.1} parent=11 // pred_region
          _
        $region32: #{adaptive_neural_ode.1} parent=11 // pred_fallthru
          _
      $region12: #{adaptive_neural_ode.1} parent=5 // pred_fallthru
        _
      %p180 = scmp.lt.s32.totalorder %s12, 7
      // Predicated region
      $region33: #{adaptive_neural_ode.1} parent=5 // pred_check
        %p181 = pneg %p180
      $region34: #{adaptive_neural_ode.1} parent=5 // pred_check_branch
        %183 = sbr.rel (%p181) target = $region36
      $region35: #{adaptive_neural_ode.1} parent=5 // pred_region
        _
      $region36: #{adaptive_neural_ode.1} parent=5 // pred_fallthru
        _
      %p184 = scmp.le.s32.totalorder 1, %s12
      %p185 = scmp.lt.s32.totalorder %s12, 8
      %p186 = pnand %p184, %p185
      %p187 = pneg %p186
      // Predicated region
      $region37: #{adaptive_neural_ode.1} parent=5 // pred_check
        _
      $region38: #{adaptive_neural_ode.1} parent=5 // pred_check_branch
        %189 = sbr.rel (%p186) target = $region40
      $region39: #{adaptive_neural_ode.1} parent=5 // pred_region
        %s190 = ssub.s32 %s12, 1
        // Predicated region
        $region41: #{adaptive_neural_ode.1} parent=39 // pred_check
          %p191 = pneg %p33
        $region42: #{adaptive_neural_ode.1} parent=39 // pred_check_branch
          %193 = sbr.rel (%p191) target = $region44
        $region43: #{adaptive_neural_ode.1} parent=39 // pred_region
          %195 = dma.done [#allocation5], 16
        $region44: #{adaptive_neural_ode.1} parent=39 // pred_fallthru
          _
        %196 = sfence
        %p197 = pneg %p33
        %p198 = pneg %p30
        %p199 = pneg %p54
        %p200 = pneg %p51
        %p201 = pneg %p75
        %p202 = pneg %p72
        %p203 = pneg %p96
        %p204 = pneg %p93
        %p205 = pneg %p117
        %p206 = pneg %p114
        %p207 = pneg %p143
        %p208 = pneg %p140
        %p209 = scmp.lt.s32.totalorder %s17, 6
        %s210 = scalar_select %p209, %s17, 6
        %s211 = smul.addr %s210, 8
        %s212 = scalar_lea.vmem %s5, %s211
        %p213 = scmp.lt.s32.totalorder %s17, 6
        %s214 = scalar_select %p213, %s17, 6
        %s215 = smul.addr %s214, 8
        %s216 = scalar_lea.vmem %s5, %s215
        %p217 = scmp.eq.s32.totalorder %s17, 0
        // Predicated region
        $region45: #{adaptive_neural_ode.1} parent=39 // pred_check
          %p218 = pneg %p217
        $region46: #{adaptive_neural_ode.1} parent=39 // pred_check_branch
          %220 = sbr.rel (%p218) target = $region48
        $region47: #{adaptive_neural_ode.1} parent=39 // pred_region
          %v221 = vld [vmem:[%s1] sm:$0xff]
          %222 = vst [vmem:[#allocation2] sm:$0xff] %v221
          %s223 = sld [smem:[#allocation4 + $0x1]]
          %s224 = sld [smem:[#allocation4]]
          %s225 = ssub.f32 %s223, %s224
          %s226 = smul.f32 %s225, 0.1
          %s227 = scalar_lea.smem [#allocation3], 0
          %228 = sst [smem:[%s227]] %s226
        $region48: #{adaptive_neural_ode.1} parent=39 // pred_fallthru
          _
        %s229 = sld [smem:[#allocation4 + %s17]]
        %s230 = sadd.s32 %s17, 1
        %s231 = sld [smem:[#allocation4 + %s230]]
        %v232 = vld [vmem:[%s4] sm:$0x1]
        %v234 = vperm.slane %v232, 0
        %s236 = sand.u32 2147483647, %s231
        %s237 = smax.f32 %s236, 1.0
        %s238 = smul.f32 %s237, 1e-07
        %v239 = vld [vmem:[#allocation2] sm:$0xff]
        %v240 = vpack.c.bf16 %v239, %v239
        %v241 = vld [vmem:[%s2] sm:$0xf]
        %v242 = vld [vmem:[%s2 + $0x4] sm:$0xf]
        %v243 = vld [vmem:[%s2 + $0x8] sm:$0xf]
        %v244 = vld [vmem:[%s2 + $0xc] sm:$0xf]
        %v245 = vld [vmem:[%s2 + $0x10] sm:$0xf]
        %v246 = vld [vmem:[%s2 + $0x14] sm:$0xf]
        %v247 = vld [vmem:[%s2 + $0x18] sm:$0xf]
        %v248 = vld [vmem:[%s2 + $0x1c] sm:$0xf]
        %v249 = vld [vmem:[%s2 + $0x20] sm:$0xf]
        %v250 = vld [vmem:[%s2 + $0x24] sm:$0xf]
        %v251 = vld [vmem:[%s2 + $0x28] sm:$0xf]
        %v252 = vld [vmem:[%s2 + $0x2c] sm:$0xf]
        %v253 = vld [vmem:[%s2 + $0x30] sm:$0xf]
        %v254 = vld [vmem:[%s2 + $0x34] sm:$0xf]
        %v255 = vld [vmem:[%s2 + $0x38] sm:$0xf]
        %v256 = vld [vmem:[%s2 + $0x3c] sm:$0xf]
        %v273 = vunpack.c.l.b16 %v241
        %v274 = vunpack.c.l.b16 %v242
        %v275 = vunpack.c.l.b16 %v243
        %v276 = vunpack.c.l.b16 %v244
        %v277 = vunpack.c.l.b16 %v245
        %v278 = vunpack.c.l.b16 %v246
        %v279 = vunpack.c.l.b16 %v247
        %v280 = vunpack.c.l.b16 %v248
        %v281 = vunpack.c.l.b16 %v249
        %v282 = vunpack.c.l.b16 %v250
        %v283 = vunpack.c.l.b16 %v251
        %v284 = vunpack.c.l.b16 %v252
        %v285 = vunpack.c.l.b16 %v253
        %v286 = vunpack.c.l.b16 %v254
        %v287 = vunpack.c.l.b16 %v255
        %v288 = vunpack.c.l.b16 %v256
        %v289 = vpack.c.b16 %v274, %v273
        %v290 = vpack.c.b16 %v276, %v275
        %v291 = vpack.c.b16 %v278, %v277
        %v292 = vpack.c.b16 %v280, %v279
        %v293 = vpack.c.b16 %v282, %v281
        %v294 = vpack.c.b16 %v284, %v283
        %v295 = vpack.c.b16 %v286, %v285
        %v296 = vpack.c.b16 %v288, %v287
        %305 = vmatpush.bf16.msra.mxu0 %v296
        %306 = vmatpush.bf16.msra.mxu0 %v295
        %307 = vmatpush.bf16.msra.mxu0 %v294
        %308 = vmatpush.bf16.msra.mxu0 %v293
        %309 = vmatpush.bf16.msra.mxu0 %v292
        %310 = vmatpush.bf16.msra.mxu0 %v291
        %311 = vmatpush.bf16.msra.mxu0 %v290
        %312 = vmatpush.bf16.msra.mxu0 %v289
        %313 = vmatmul.bf16.gmra.mxu0 %v240
        %v314 = vpop.f32.mrf.mxu0
        %v315 = vadd.f32 0.0, %v314
        %v316 = vpop.f32.mrf.mxu0
        %317 = vdwg.mxu0
        %v318 = vtanh.pop %v315
        %v319 = vpack.c.bf16 %v318, %v318
        %v320 = vld [vmem:[%s3] sm:$0xf]
        %v321 = vld [vmem:[%s3 + $0x4] sm:$0xf]
        %v322 = vld [vmem:[%s3 + $0x8] sm:$0xf]
        %v323 = vld [vmem:[%s3 + $0xc] sm:$0xf]
        %v324 = vld [vmem:[%s3 + $0x10] sm:$0xf]
        %v325 = vld [vmem:[%s3 + $0x14] sm:$0xf]
        %v326 = vld [vmem:[%s3 + $0x18] sm:$0xf]
        %v327 = vld [vmem:[%s3 + $0x1c] sm:$0xf]
        %v328 = vld [vmem:[%s3 + $0x20] sm:$0xf]
        %v329 = vld [vmem:[%s3 + $0x24] sm:$0xf]
        %v330 = vld [vmem:[%s3 + $0x28] sm:$0xf]
        %v331 = vld [vmem:[%s3 + $0x2c] sm:$0xf]
        %v332 = vld [vmem:[%s3 + $0x30] sm:$0xf]
        %v333 = vld [vmem:[%s3 + $0x34] sm:$0xf]
        %v334 = vld [vmem:[%s3 + $0x38] sm:$0xf]
        %v335 = vld [vmem:[%s3 + $0x3c] sm:$0xf]
        %v352 = vunpack.c.l.b16 %v320
        %v353 = vunpack.c.l.b16 %v321
        %v354 = vunpack.c.l.b16 %v322
        %v355 = vunpack.c.l.b16 %v323
        %v356 = vunpack.c.l.b16 %v324
        %v357 = vunpack.c.l.b16 %v325
        %v358 = vunpack.c.l.b16 %v326
        %v359 = vunpack.c.l.b16 %v327
        %v360 = vunpack.c.l.b16 %v328
        %v361 = vunpack.c.l.b16 %v329
        %v362 = vunpack.c.l.b16 %v330
        %v363 = vunpack.c.l.b16 %v331
        %v364 = vunpack.c.l.b16 %v332
        %v365 = vunpack.c.l.b16 %v333
        %v366 = vunpack.c.l.b16 %v334
        %v367 = vunpack.c.l.b16 %v335
        %v368 = vpack.c.b16 %v353, %v352
        %v369 = vpack.c.b16 %v355, %v354
        %v370 = vpack.c.b16 %v357, %v356
        %v371 = vpack.c.b16 %v359, %v358
        %v372 = vpack.c.b16 %v361, %v360
        %v373 = vpack.c.b16 %v363, %v362
        %v374 = vpack.c.b16 %v365, %v364
        %v375 = vpack.c.b16 %v367, %v366
        %384 = vmatpush.bf16.msra.mxu0 %v375
        %385 = vmatpush.bf16.msra.mxu0 %v374
        %386 = vmatpush.bf16.msra.mxu0 %v373
        %387 = vmatpush.bf16.msra.mxu0 %v372
        %388 = vmatpush.bf16.msra.mxu0 %v371
        %389 = vmatpush.bf16.msra.mxu0 %v370
        %390 = vmatpush.bf16.msra.mxu0 %v369
        %391 = vmatpush.bf16.msra.mxu0 %v368
        %392 = vmatmul.bf16.gmra.mxu0 %v319
        %v393 = vpop.f32.mrf.mxu0
        %v394 = vadd.f32 %v234, %v393
        %v395 = vpop.f32.mrf.mxu0
        %396 = vdwg.mxu0
        %s397 = sld [smem:[#allocation3]]
        // While loop
        $region49: #{adaptive_neural_ode.1} parent=39 // loop_pre_header
          _
        $region50: #{adaptive_neural_ode.1} parent=39 // loop_header
          %s399 = sphi %s229, %s818
          %s400 = sphi %s397, %s824
          %s401 = sphi 0, %s825
          %v402 = vphi %v239, %v815
          %v403 = vphi %v394, %v816
          %s404 = ssub.f32 %s231, %s238
          %p405 = scmp.lt.f32.partialorder %s399, %s404
          %p406 = scmp.lt.s32.totalorder %s401, 10000
          %p407 = pnand %p405, %p406
          %p408 = pneg %p407
        $region51: #{adaptive_neural_ode.1} parent=39 // loop_header_branch
          %410 = sbr.rel (%p407) target = $region55
        $region52: #{adaptive_neural_ode.1} parent=39 // loop_body
          %s411 = ssub.f32 %s231, %s399
          %s412 = smin.f32 %s400, %s411
          %v413 = vstv %s412
          %v414 = vmul.f32 %v413, %v403
          %v415 = vmul.f32 %v414, 0.2
          %v416 = vadd.f32 %v402, %v415
          %v417 = vpack.c.bf16 %v416, %v416
          %v418 = vld [vmem:[%s2] sm:$0xf]
          %v419 = vld [vmem:[%s2 + $0x4] sm:$0xf]
          %v420 = vld [vmem:[%s2 + $0x8] sm:$0xf]
          %v421 = vld [vmem:[%s2 + $0xc] sm:$0xf]
          %v422 = vld [vmem:[%s2 + $0x10] sm:$0xf]
          %v423 = vld [vmem:[%s2 + $0x14] sm:$0xf]
          %v424 = vld [vmem:[%s2 + $0x18] sm:$0xf]
          %v425 = vld [vmem:[%s2 + $0x1c] sm:$0xf]
          %v426 = vld [vmem:[%s2 + $0x20] sm:$0xf]
          %v427 = vld [vmem:[%s2 + $0x24] sm:$0xf]
          %v428 = vld [vmem:[%s2 + $0x28] sm:$0xf]
          %v429 = vld [vmem:[%s2 + $0x2c] sm:$0xf]
          %v430 = vld [vmem:[%s2 + $0x30] sm:$0xf]
          %v431 = vld [vmem:[%s2 + $0x34] sm:$0xf]
          %v432 = vld [vmem:[%s2 + $0x38] sm:$0xf]
          %v433 = vld [vmem:[%s2 + $0x3c] sm:$0xf]
          %v450 = vunpack.c.l.b16 %v418
          %v451 = vunpack.c.l.b16 %v419
          %v452 = vunpack.c.l.b16 %v420
          %v453 = vunpack.c.l.b16 %v421
          %v454 = vunpack.c.l.b16 %v422
          %v455 = vunpack.c.l.b16 %v423
          %v456 = vunpack.c.l.b16 %v424
          %v457 = vunpack.c.l.b16 %v425
          %v458 = vunpack.c.l.b16 %v426
          %v459 = vunpack.c.l.b16 %v427
          %v460 = vunpack.c.l.b16 %v428
          %v461 = vunpack.c.l.b16 %v429
          %v462 = vunpack.c.l.b16 %v430
          %v463 = vunpack.c.l.b16 %v431
          %v464 = vunpack.c.l.b16 %v432
          %v465 = vunpack.c.l.b16 %v433
          %v466 = vpack.c.b16 %v451, %v450
          %v467 = vpack.c.b16 %v453, %v452
          %v468 = vpack.c.b16 %v455, %v454
          %v469 = vpack.c.b16 %v457, %v456
          %v470 = vpack.c.b16 %v459, %v458
          %v471 = vpack.c.b16 %v461, %v460
          %v472 = vpack.c.b16 %v463, %v462
          %v473 = vpack.c.b16 %v465, %v464
          %482 = vmatpush.bf16.msra.mxu0 %v473
          %483 = vmatpush.bf16.msra.mxu0 %v472
          %484 = vmatpush.bf16.msra.mxu0 %v471
          %485 = vmatpush.bf16.msra.mxu0 %v470
          %486 = vmatpush.bf16.msra.mxu0 %v469
          %487 = vmatpush.bf16.msra.mxu0 %v468
          %488 = vmatpush.bf16.msra.mxu0 %v467
          %489 = vmatpush.bf16.msra.mxu0 %v466
          %490 = vmatmul.bf16.gmra.mxu0 %v417
          %v491 = vpop.f32.mrf.mxu0
          %v492 = vadd.f32 0.0, %v491
          %v493 = vpop.f32.mrf.mxu0
          %494 = vdwg.mxu0
          %v495 = vtanh.pop %v492
          %v496 = vpack.c.bf16 %v495, %v495
          %v497 = vld [vmem:[%s3] sm:$0xf]
          %v498 = vld [vmem:[%s3 + $0x4] sm:$0xf]
          %v499 = vld [vmem:[%s3 + $0x8] sm:$0xf]
          %v500 = vld [vmem:[%s3 + $0xc] sm:$0xf]
          %v501 = vld [vmem:[%s3 + $0x10] sm:$0xf]
          %v502 = vld [vmem:[%s3 + $0x14] sm:$0xf]
          %v503 = vld [vmem:[%s3 + $0x18] sm:$0xf]
          %v504 = vld [vmem:[%s3 + $0x1c] sm:$0xf]
          %v505 = vld [vmem:[%s3 + $0x20] sm:$0xf]
          %v506 = vld [vmem:[%s3 + $0x24] sm:$0xf]
          %v507 = vld [vmem:[%s3 + $0x28] sm:$0xf]
          %v508 = vld [vmem:[%s3 + $0x2c] sm:$0xf]
          %v509 = vld [vmem:[%s3 + $0x30] sm:$0xf]
          %v510 = vld [vmem:[%s3 + $0x34] sm:$0xf]
          %v511 = vld [vmem:[%s3 + $0x38] sm:$0xf]
          %v512 = vld [vmem:[%s3 + $0x3c] sm:$0xf]
          %v529 = vunpack.c.l.b16 %v497
          %v530 = vunpack.c.l.b16 %v498
          %v531 = vunpack.c.l.b16 %v499
          %v532 = vunpack.c.l.b16 %v500
          %v533 = vunpack.c.l.b16 %v501
          %v534 = vunpack.c.l.b16 %v502
          %v535 = vunpack.c.l.b16 %v503
          %v536 = vunpack.c.l.b16 %v504
          %v537 = vunpack.c.l.b16 %v505
          %v538 = vunpack.c.l.b16 %v506
          %v539 = vunpack.c.l.b16 %v507
          %v540 = vunpack.c.l.b16 %v508
          %v541 = vunpack.c.l.b16 %v509
          %v542 = vunpack.c.l.b16 %v510
          %v543 = vunpack.c.l.b16 %v511
          %v544 = vunpack.c.l.b16 %v512
          %v545 = vpack.c.b16 %v530, %v529
          %v546 = vpack.c.b16 %v532, %v531
          %v547 = vpack.c.b16 %v534, %v533
          %v548 = vpack.c.b16 %v536, %v535
          %v549 = vpack.c.b16 %v538, %v537
          %v550 = vpack.c.b16 %v540, %v539
          %v551 = vpack.c.b16 %v542, %v541
          %v552 = vpack.c.b16 %v544, %v543
          %561 = vmatpush.bf16.msra.mxu0 %v552
          %562 = vmatpush.bf16.msra.mxu0 %v551
          %563 = vmatpush.bf16.msra.mxu0 %v550
          %564 = vmatpush.bf16.msra.mxu0 %v549
          %565 = vmatpush.bf16.msra.mxu0 %v548
          %566 = vmatpush.bf16.msra.mxu0 %v547
          %567 = vmatpush.bf16.msra.mxu0 %v546
          %568 = vmatpush.bf16.msra.mxu0 %v545
          %569 = vmatmul.bf16.gmra.mxu0 %v496
          %v570 = vpop.f32.mrf.mxu0
          %v571 = vadd.f32 %v234, %v570
          %v572 = vpop.f32.mrf.mxu0
          %573 = vdwg.mxu0
          %v574 = vmul.f32 %v413, %v571
          %v575 = vmul.f32 %v414, 0.075
          %v576 = vmul.f32 %v574, 0.225
          %v577 = vadd.f32 %v575, %v576
          %v578 = vadd.f32 %v402, %v577
          %v579 = vpack.c.bf16 %v578, %v578
          %580 = vmatpush.bf16.msra.mxu0 %v473
          %581 = vmatpush.bf16.msra.mxu0 %v472
          %582 = vmatpush.bf16.msra.mxu0 %v471
          %583 = vmatpush.bf16.msra.mxu0 %v470
          %584 = vmatpush.bf16.msra.mxu0 %v469
          %585 = vmatpush.bf16.msra.mxu0 %v468
          %586 = vmatpush.bf16.msra.mxu0 %v467
          %587 = vmatpush.bf16.msra.mxu0 %v466
          %588 = vmatmul.bf16.gmra.mxu0 %v579
          %v589 = vpop.f32.mrf.mxu0
          %v590 = vadd.f32 0.0, %v589
          %v591 = vpop.f32.mrf.mxu0
          %592 = vdwg.mxu0
          %v593 = vtanh.pop %v590
          %v594 = vpack.c.bf16 %v593, %v593
          %595 = vmatpush.bf16.msra.mxu0 %v552
          %596 = vmatpush.bf16.msra.mxu0 %v551
          %597 = vmatpush.bf16.msra.mxu0 %v550
          %598 = vmatpush.bf16.msra.mxu0 %v549
          %599 = vmatpush.bf16.msra.mxu0 %v548
          %600 = vmatpush.bf16.msra.mxu0 %v547
          %601 = vmatpush.bf16.msra.mxu0 %v546
          %602 = vmatpush.bf16.msra.mxu0 %v545
          %603 = vmatmul.bf16.gmra.mxu0 %v594
          %v604 = vpop.f32.mrf.mxu0
          %v605 = vadd.f32 %v234, %v604
          %v606 = vpop.f32.mrf.mxu0
          %607 = vdwg.mxu0
          %v608 = vmul.f32 %v413, %v605
          %v609 = vmul.f32 %v414, 0.9777778
          %v610 = vmul.f32 %v574, -3.7333333
          %v611 = vadd.f32 %v609, %v610
          %v612 = vmul.f32 %v608, 3.5555556
          %v613 = vadd.f32 %v611, %v612
          %v614 = vadd.f32 %v402, %v613
          %v615 = vpack.c.bf16 %v614, %v614
          %616 = vmatpush.bf16.msra.mxu0 %v473
          %617 = vmatpush.bf16.msra.mxu0 %v472
          %618 = vmatpush.bf16.msra.mxu0 %v471
          %619 = vmatpush.bf16.msra.mxu0 %v470
          %620 = vmatpush.bf16.msra.mxu0 %v469
          %621 = vmatpush.bf16.msra.mxu0 %v468
          %622 = vmatpush.bf16.msra.mxu0 %v467
          %623 = vmatpush.bf16.msra.mxu0 %v466
          %624 = vmatmul.bf16.gmra.mxu0 %v615
          %v625 = vpop.f32.mrf.mxu0
          %v626 = vadd.f32 0.0, %v625
          %v627 = vpop.f32.mrf.mxu0
          %628 = vdwg.mxu0
          %v629 = vtanh.pop %v626
          %v630 = vpack.c.bf16 %v629, %v629
          %631 = vmatpush.bf16.msra.mxu0 %v552
          %632 = vmatpush.bf16.msra.mxu0 %v551
          %633 = vmatpush.bf16.msra.mxu0 %v550
          %634 = vmatpush.bf16.msra.mxu0 %v549
          %635 = vmatpush.bf16.msra.mxu0 %v548
          %636 = vmatpush.bf16.msra.mxu0 %v547
          %637 = vmatpush.bf16.msra.mxu0 %v546
          %638 = vmatpush.bf16.msra.mxu0 %v545
          %639 = vmatmul.bf16.gmra.mxu0 %v630
          %v640 = vpop.f32.mrf.mxu0
          %v641 = vadd.f32 %v234, %v640
          %v642 = vpop.f32.mrf.mxu0
          %643 = vdwg.mxu0
          %v644 = vmul.f32 %v413, %v641
          %v645 = vmul.f32 %v414, 2.9525986
          %v646 = vmul.f32 %v574, -11.595794
          %v647 = vadd.f32 %v645, %v646
          %v648 = vmul.f32 %v608, 9.822893
          %v649 = vadd.f32 %v647, %v648
          %v650 = vmul.f32 %v644, -0.29080933
          %v651 = vadd.f32 %v649, %v650
          %v652 = vadd.f32 %v402, %v651
          %v653 = vpack.c.bf16 %v652, %v652
          %654 = vmatpush.bf16.msra.mxu0 %v473
          %655 = vmatpush.bf16.msra.mxu0 %v472
          %656 = vmatpush.bf16.msra.mxu0 %v471
          %657 = vmatpush.bf16.msra.mxu0 %v470
          %658 = vmatpush.bf16.msra.mxu0 %v469
          %659 = vmatpush.bf16.msra.mxu0 %v468
          %660 = vmatpush.bf16.msra.mxu0 %v467
          %661 = vmatpush.bf16.msra.mxu0 %v466
          %662 = vmatmul.bf16.gmra.mxu0 %v653
          %v663 = vpop.f32.mrf.mxu0
          %v664 = vadd.f32 0.0, %v663
          %v665 = vpop.f32.mrf.mxu0
          %666 = vdwg.mxu0
          %v667 = vtanh.pop %v664
          %v668 = vpack.c.bf16 %v667, %v667
          %669 = vmatpush.bf16.msra.mxu0 %v552
          %670 = vmatpush.bf16.msra.mxu0 %v551
          %671 = vmatpush.bf16.msra.mxu0 %v550
          %672 = vmatpush.bf16.msra.mxu0 %v549
          %673 = vmatpush.bf16.msra.mxu0 %v548
          %674 = vmatpush.bf16.msra.mxu0 %v547
          %675 = vmatpush.bf16.msra.mxu0 %v546
          %676 = vmatpush.bf16.msra.mxu0 %v545
          %677 = vmatmul.bf16.gmra.mxu0 %v668
          %v678 = vpop.f32.mrf.mxu0
          %v679 = vadd.f32 %v234, %v678
          %v680 = vpop.f32.mrf.mxu0
          %681 = vdwg.mxu0
          %v682 = vmul.f32 %v413, %v679
          %v683 = vmul.f32 %v414, 2.8462753
          %v684 = vmul.f32 %v574, -10.757576
          %v685 = vadd.f32 %v683, %v684
          %v686 = vmul.f32 %v608, 8.906423
          %v687 = vadd.f32 %v685, %v686
          %v688 = vmul.f32 %v644, 0.2784091
          %v689 = vadd.f32 %v687, %v688
          %v690 = vmul.f32 %v682, -0.27353132
          %v691 = vadd.f32 %v689, %v690
          %v692 = vadd.f32 %v402, %v691
          %v693 = vpack.c.bf16 %v692, %v692
          %694 = vmatpush.bf16.msra.mxu0 %v473
          %695 = vmatpush.bf16.msra.mxu0 %v472
          %696 = vmatpush.bf16.msra.mxu0 %v471
          %697 = vmatpush.bf16.msra.mxu0 %v470
          %698 = vmatpush.bf16.msra.mxu0 %v469
          %699 = vmatpush.bf16.msra.mxu0 %v468
          %700 = vmatpush.bf16.msra.mxu0 %v467
          %701 = vmatpush.bf16.msra.mxu0 %v466
          %702 = vmatmul.bf16.gmra.mxu0 %v693
          %v703 = vpop.f32.mrf.mxu0
          %v704 = vadd.f32 0.0, %v703
          %v705 = vpop.f32.mrf.mxu0
          %706 = vdwg.mxu0
          %v707 = vtanh.pop %v704
          %v708 = vpack.c.bf16 %v707, %v707
          %709 = vmatpush.bf16.msra.mxu0 %v552
          %710 = vmatpush.bf16.msra.mxu0 %v551
          %711 = vmatpush.bf16.msra.mxu0 %v550
          %712 = vmatpush.bf16.msra.mxu0 %v549
          %713 = vmatpush.bf16.msra.mxu0 %v548
          %714 = vmatpush.bf16.msra.mxu0 %v547
          %715 = vmatpush.bf16.msra.mxu0 %v546
          %716 = vmatpush.bf16.msra.mxu0 %v545
          %717 = vmatmul.bf16.gmra.mxu0 %v708
          %v718 = vpop.f32.mrf.mxu0
          %v719 = vadd.f32 %v234, %v718
          %v720 = vpop.f32.mrf.mxu0
          %721 = vdwg.mxu0
          %v722 = vmul.f32 %v413, %v719
          %v723 = vmul.f32 %v414, 0.091145836
          %v724 = vmul.f32 %v608, 0.4492363
          %v725 = vadd.f32 %v723, %v724
          %v726 = vmul.f32 %v644, 0.6510417
          %v727 = vadd.f32 %v725, %v726
          %v728 = vmul.f32 %v682, -0.3223762
          %v729 = vadd.f32 %v727, %v728
          %v730 = vmul.f32 %v722, 0.13095239
          %v731 = vadd.f32 %v729, %v730
          %v732 = vadd.f32 %v402, %v731
          %v733 = vpack.c.bf16 %v732, %v732
          %734 = vmatpush.bf16.msra.mxu0 %v473
          %735 = vmatpush.bf16.msra.mxu0 %v472
          %736 = vmatpush.bf16.msra.mxu0 %v471
          %737 = vmatpush.bf16.msra.mxu0 %v470
          %738 = vmatpush.bf16.msra.mxu0 %v469
          %739 = vmatpush.bf16.msra.mxu0 %v468
          %740 = vmatpush.bf16.msra.mxu0 %v467
          %741 = vmatpush.bf16.msra.mxu0 %v466
          %742 = vmatmul.bf16.gmra.mxu0 %v733
          %v743 = vpop.f32.mrf.mxu0
          %v744 = vadd.f32 0.0, %v743
          %v745 = vpop.f32.mrf.mxu0
          %746 = vdwg.mxu0
          %v747 = vtanh.pop %v744
          %v748 = vpack.c.bf16 %v747, %v747
          %749 = vmatpush.bf16.msra.mxu0 %v552
          %750 = vmatpush.bf16.msra.mxu0 %v551
          %751 = vmatpush.bf16.msra.mxu0 %v550
          %752 = vmatpush.bf16.msra.mxu0 %v549
          %753 = vmatpush.bf16.msra.mxu0 %v548
          %754 = vmatpush.bf16.msra.mxu0 %v547
          %755 = vmatpush.bf16.msra.mxu0 %v546
          %756 = vmatpush.bf16.msra.mxu0 %v545
          %757 = vmatmul.bf16.gmra.mxu0 %v748
          %v758 = vpop.f32.mrf.mxu0
          %v759 = vadd.f32 %v234, %v758
          %v760 = vpop.f32.mrf.mxu0
          %761 = vdwg.mxu0
          %v762 = vmul.f32 %v413, %v759
          %v763 = vmul.f32 %v414, 0.0012326388
          %v764 = vmul.f32 %v608, -0.0042527704
          %v765 = vadd.f32 %v763, %v764
          %v766 = vmul.f32 %v644, 0.036979165
          %v767 = vadd.f32 %v765, %v766
          %v768 = vmul.f32 %v682, -0.0508638
          %v769 = vadd.f32 %v767, %v768
          %v770 = vmul.f32 %v722, 0.041904762
          %v771 = vadd.f32 %v769, %v770
          %v772 = vmul.f32 %v762, -0.025
          %v773 = vadd.f32 %v771, %v772
          %v774 = vand.u32 2147483647, %v402
          %v775 = vand.u32 2147483647, %v732
          %v776 = vmax.f32 %v774, %v775
          %v777 = vmul.f32 %v776, 0.001
          %v778 = vadd.f32 %v777, 0.001
          %v779 = vrcp.pop %v778
          %v780 = vmul.f32 %v773, %v779
          %v781 = vmul.f32 %v780, %v780
          %782 = vadd.xlane.f32.xlu0 %v781
          %v783 = vpop.xlane.xlu0 %782
          %v784 = vrot.slane %v783, 4
          %v785 = vadd.f32 %v783, %v784
          %v786 = vrot.slane %v785, 2
          %v787 = vadd.f32 %v785, %v786
          %v788 = vrot.slane %v787, 1
          %v789 = vadd.f32 %v787, %v788
          %s790 = vtos %v789
          %s791 = smul.f32 %s790, 0.00390625
          %p792 = scmp.ge.f32.partialorder %s791, 0.0
          %p793 = scmp.lt.f32.partialorder %s791, 1e+30
          %p794 = pnand %p792, %p793
          %p795 = pneg %p794
          %p796 = scmp.le.f32.partialorder %s791, 1.0
          %p797 = pnand %p795, %p796
          %p798 = pneg %p797
          %v799 = vstv %s791
          %v800 = vmax.f32 %v799, 1e-20
          %v801 = vlog2.pop %v800
          %v802 = vmul.f32 %v801, 0.6931472
          %v803 = vmul.f32 %v802, -0.1
          %v804 = vmul.f32 %v803, 1.442695
          %v805 = vpow.pop %v804
          %v806 = vmul.f32 %v805, 0.9
          %v807 = vmax.f32 %v806, 0.2
          %v808 = vmin.f32 %v807, 10.0
          %v809 = vadd.f32 %v808, 0.0
          %s810 = vtos %v809
          %s811 = scalar_select %p795, %s810, 0.2
          %s812 = scalar_select %p798, 1, 0
          %v813 = vstv %s812
          %vm814 = vcmp.eq.s32.totalorder %v813, 1
          %v815 = vsel %vm814, %v732, %v402
          %v816 = vsel %vm814, %v759, %v403
          %s817 = sadd.f32 %s399, %s412
          %s818 = scalar_select %p798, %s817, %s399
          %s819 = smul.f32 %s412, %s811
          %p820 = scmp.lt.f32.partialorder %s412, %s400
          %p821 = pnand %p798, %p820
          %p822 = pneg %p821
          %s823 = smax.f32 %s400, %s819
          %s824 = scalar_select %p822, %s823, %s819
          %s825 = sadd.s32 %s401, 1
        $region53: #{adaptive_neural_ode.1} parent=39 // loop_footer
          _
        $region54: #{adaptive_neural_ode.1} parent=39 // loop_footer_branch
          %398 = sbr.rel target = $region50
        $region55: #{adaptive_neural_ode.1} parent=39 // loop_exit
          _
        %s826 = scalar_lea.smem [#allocation3], 0
        %827 = sst [smem:[%s826]] %s400
        %828 = vst [vmem:[#allocation2] sm:$0xff] %v402
        %829 = vst [vmem:[%s216] sm:$0xff] %v402
        %p830 = scmp.lt.s32.totalorder %s17, 6
        %s831 = scalar_select %p830, %s17, 6
        %s832 = smul.addr %s831, 8
        %s833 = scalar_lea.vmem %s5, %s832
        // Predicated region
        $region56: #{adaptive_neural_ode.1} parent=39 // pred_check
          %p834 = pneg %p140
        $region57: #{adaptive_neural_ode.1} parent=39 // pred_check_branch
          %836 = sbr.rel (%p834) target = $region59
        $region58: #{adaptive_neural_ode.1} parent=39 // pred_region
          _
        $region59: #{adaptive_neural_ode.1} parent=39 // pred_fallthru
          _
      $region40: #{adaptive_neural_ode.1} parent=5 // pred_fallthru
        _
      %p837 = scmp.le.s32.totalorder 2, %s12
      // Predicated region
      $region60: #{adaptive_neural_ode.1} parent=5 // pred_check
        %p838 = pneg %p837
      $region61: #{adaptive_neural_ode.1} parent=5 // pred_check_branch
        %840 = sbr.rel (%p838) target = $region63
      $region62: #{adaptive_neural_ode.1} parent=5 // pred_region
        %s841 = ssub.s32 %s12, 2
        // Predicated region
        $region64: #{adaptive_neural_ode.1} parent=62 // pred_check
          %p842 = pneg %p146
        $region65: #{adaptive_neural_ode.1} parent=62 // pred_check_branch
          %844 = sbr.rel (%p842) target = $region67
        $region66: #{adaptive_neural_ode.1} parent=62 // pred_region
          %p845 = scmp.lt.s32.totalorder %s18, 6
          %s846 = scalar_select %p845, %s18, 6
          %s847 = smul.addr %s846, 8
          %s848 = scalar_lea.vmem %s5, %s847
        $region67: #{adaptive_neural_ode.1} parent=62 // pred_fallthru
          _
      $region63: #{adaptive_neural_ode.1} parent=5 // pred_fallthru
        _
    $region6: #{adaptive_neural_ode.1} parent=1 // loop_footer
      %s16 = sadd.s32 1, %s12
    $region7: #{adaptive_neural_ode.1} parent=1 // loop_footer_branch
      %11 = sbr.rel target = $region3
    $region8: #{adaptive_neural_ode.1} parent=1 // loop_exit
      _
    %849 = vsyncpa [#allocation5], 1
    %s850 = scalar_lea.sflag [#allocation5], 1
    %851 = vsyncpa %s850, 1

</llo_original>
